<compile_context>
chip_gen: v7x
topology: tpu7x:2x2x1
jax: 0.10.0
libtpu: 0.0.40
codegen_flags: <defaults>
</compile_context>

<pallas_src>
import functools

import jax
import jax.numpy as jnp
from jax.experimental import pallas as pl
from jax.experimental.pallas import tpu as pltpu


def _mlp_kernel(x_ref, w1t_ref, b1_ref, w2t_ref, b2_ref, o_ref, *,
                out_chans, approx_gelu):
    # x_ref:   (1, C, T)   f32/bf16    w1t_ref: (HID, C)     bf16
    # b1_ref:  (HID, 1)    f32         w2t_ref: (OUTP, HID)  bf16 (rows padded)
    # b2_ref:  (OUTP, 1)   f32         o_ref:   (1, out_chans, T)
    x = x_ref[0].astype(jnp.bfloat16)                                  # (C, T)
    # fc1: (HID, C) @ (C, T) -> (HID, T) on the MXU, f32 accumulation.
    h = jnp.dot(w1t_ref[...], x, preferred_element_type=jnp.float32)
    h = h + b1_ref[...]                                                # (HID,1) broadcast
    # approximate=True -> tanh formulation: transcendental goes to the EUP
    # slot, only a short polynomial stays on the VALU (was the binding unit).
    h = jax.nn.gelu(h, approximate=approx_gelu)
    # fc2: (OUTP, HID) @ (HID, T) -> (OUTP, T)
    y = jnp.dot(w2t_ref[...], h.astype(jnp.bfloat16),
                preferred_element_type=jnp.float32)
    y = y + b2_ref[...]
    # Drop the MXU sublane padding at store time: output stays unpadded in HBM.
    o_ref[0] = y[:out_chans].astype(o_ref.dtype)


def prepare_params(w1, b1, w2, b2):
    """One-time weight prep (hoisted out of the forward path).

    w1: (C, 2C), b1: (2C,), w2: (2C, out), b2: (out,)  ->
      w1t (2C, C) bf16, b1c (2C, 1) f32,
      w2t (out_pad, 2C) bf16 zero-padded, b2c (out_pad, 1) f32, out_chans.
    """
    hidden = w1.shape[1]
    out_chans = w2.shape[1]
    out_pad = ((out_chans + 7) // 8) * 8          # sublane-align fc2 output rows
    w1t = jnp.asarray(w1).T.astype(jnp.bfloat16)                       # (HID, C)
    w2t = jnp.zeros((out_pad, hidden), jnp.bfloat16)
    w2t = w2t.at[:out_chans].set(jnp.asarray(w2).T.astype(jnp.bfloat16))
    b1c = jnp.asarray(b1).reshape(hidden, 1).astype(jnp.float32)
    b2c = jnp.zeros((out_pad, 1), jnp.float32)
    b2c = b2c.at[:out_chans, 0].set(jnp.asarray(b2).astype(jnp.float32))
    return w1t, b1c, w2t, b2c, out_chans


@functools.partial(jax.jit,
                   static_argnames=("out_chans", "tile_hw", "approx_gelu"))
def last_layer_forward(x_nchw, w1t, b1c, w2t, b2c, *, out_chans,
                       tile_hw=1024, approx_gelu=True):
    """x_nchw: (B, C, H, W) f32 (or bf16). Prepped weights from prepare_params.

    Returns (B, out_chans, H, W) in x_nchw.dtype. Matmuls run in bf16 on the
    MXU with f32 accumulation.
    """
    B, C, H, W = x_nchw.shape
    hidden = w1t.shape[0]
    out_pad = w2t.shape[0]

    HW = H * W
    x3 = x_nchw.reshape(B, C, HW)                 # free reshape, no transpose

    # Tile along the H*W (lane) axis: full-extent block if HW is small,
    # otherwise a multiple of 128 (Pallas masks the partial edge block).
    t = HW if HW <= tile_hw else tile_hw
    if B == 1 and HW > 128 and pl.cdiv(HW, t) < 2:
        # Guarantee >= 2 grid steps so both v7x TensorCores get work.
        t = max(128, ((pl.cdiv(HW, 2) + 127) // 128) * 128)
    grid = (B, pl.cdiv(HW, t))

    kernel = functools.partial(_mlp_kernel, out_chans=out_chans,
                               approx_gelu=approx_gelu)

    out3 = pl.pallas_call(
        kernel,
        out_shape=jax.ShapeDtypeStruct((B, out_chans, HW), x_nchw.dtype),
        grid_spec=pltpu.PrefetchScalarGridSpec(
            num_scalar_prefetch=0,
            grid=grid,
            in_specs=[
                pl.BlockSpec((1, C, t), lambda b, i: (b, 0, i)),
                pl.BlockSpec((hidden, C), lambda b, i: (0, 0)),
                pl.BlockSpec((hidden, 1), lambda b, i: (0, 0)),
                pl.BlockSpec((out_pad, hidden), lambda b, i: (0, 0)),
                pl.BlockSpec((out_pad, 1), lambda b, i: (0, 0)),
            ],
            out_specs=pl.BlockSpec((1, out_chans, t), lambda b, i: (b, 0, i)),
        ),
        compiler_params=pltpu.CompilerParams(
            dimension_semantics=("parallel", "parallel"),
        ),
    )(x3, w1t, b1c, w2t, b2c)

    # Output is already unpadded; reshape back to NCHW (no transpose needed).
    return out3.reshape(B, out_chans, H, W)


def init_params(key, in_chans, out_chans, mlpratio=2):
    """Deterministic init mimicking nn.Linear (uniform in +/- 1/sqrt(fan_in))."""
    hidden = in_chans * mlpratio
    k1, k2, k3, k4 = jax.random.split(key, 4)
    bnd1 = 1.0 / jnp.sqrt(in_chans)
    bnd2 = 1.0 / jnp.sqrt(hidden)
    w1 = jax.random.uniform(k1, (in_chans, hidden), jnp.float32, -bnd1, bnd1)
    b1 = jax.random.uniform(k2, (hidden,), jnp.float32, -bnd1, bnd1)
    w2 = jax.random.uniform(k3, (hidden, out_chans), jnp.float32, -bnd2, bnd2)
    b2 = jax.random.uniform(k4, (out_chans,), jnp.float32, -bnd2, bnd2)
    return w1, b1, w2, b2


def reference_forward(x_nchw, w1, b1, w2, b2):
    """Pure-JAX f32 reference matching the PyTorch module (exact-erf GELU)."""
    B, C, H, W = x_nchw.shape
    x = jnp.transpose(x_nchw, (0, 2, 3, 1)).reshape(B * H * W, C)
    h = jax.nn.gelu(x @ w1 + b1[None, :], approximate=False)
    y = h @ w2 + b2[None, :]
    return y.reshape(B, H, W, -1).transpose(0, 3, 1, 2)


if __name__ == "__main__":
    key = jax.random.PRNGKey(0)
    k_x, k_p = jax.random.split(key)

    B, C, H, W = 2, 96, 16, 16   # in_chans=96 (module default)
    OUT = 6

    x = jax.random.normal(k_x, (B, C, H, W), jnp.float32)
    w1, b1, w2, b2 = init_params(k_p, C, OUT)

    # One-time weight prep, then the jitted forward.
    w1t, b1c, w2t, b2c, out_chans = prepare_params(w1, b1, w2, b2)
    out = last_layer_forward(x, w1t, b1c, w2t, b2c, out_chans=out_chans)
    out = jax.block_until_ready(out)

    ref = reference_forward(x, w1, b1, w2, b2)
    assert out.shape == (B, OUT, H, W), out.shape
    # Loose tolerance: kernel matmuls run on the bf16 MXU (f32 accumulation)
    # and GELU uses the tanh approximation; reference is full f32 exact-erf.
    max_err = float(jnp.abs(out - ref).max())
    assert jnp.allclose(out, ref, atol=2e-2, rtol=2e-2), max_err

    print("KERNEL_OK")
</pallas_src>

<mosaic_0001>
module attributes {stable_mosaic.version = 11 : i64} {
  func.func @_mlp_kernel(%arg0: i32, %arg1: i32, %arg2: memref<1x96x256xf32, #tpu.memory_space<vmem>>, %arg3: memref<192x96xbf16, #tpu.memory_space<vmem>>, %arg4: memref<192x1xf32, #tpu.memory_space<vmem>>, %arg5: memref<8x192xbf16, #tpu.memory_space<vmem>>, %arg6: memref<8x1xf32, #tpu.memory_space<vmem>>, %arg7: memref<1x6x256xf32, #tpu.memory_space<vmem>>) attributes {dimension_semantics = [#tpu.dimension_semantics<parallel>, #tpu.dimension_semantics<parallel>], iteration_bounds = array<i64: 2, 1>, scalar_prefetch = 0 : i64, scratch_operands = 0 : i64, tpu.core_type = #tpu.core_type<tc>, window_params = [{transform_indices = @transform_0, window_bounds = array<i64: 1, 96, 256>}, {pipeline_mode = #tpu.pipeline_mode<synchronous>, transform_indices = @transform_1, window_bounds = array<i64: 192, 96>}, {pipeline_mode = #tpu.pipeline_mode<synchronous>, transform_indices = @transform_2, window_bounds = array<i64: 192, 1>}, {pipeline_mode = #tpu.pipeline_mode<synchronous>, transform_indices = @transform_3, window_bounds = array<i64: 8, 192>}, {pipeline_mode = #tpu.pipeline_mode<synchronous>, transform_indices = @transform_4, window_bounds = array<i64: 8, 1>}, {transform_indices = @transform_5, window_bounds = array<i64: 1, 6, 256>}]} {
    %c0 = arith.constant 0 : index
    %c0_0 = arith.constant 0 : index
    %c0_1 = arith.constant 0 : index
    %0 = vector.load %arg2[%c0, %c0_0, %c0_1] : memref<1x96x256xf32, #tpu.memory_space<vmem>>, vector<1x96x256xf32>
    %1 = vector.shape_cast %0 : vector<1x96x256xf32> to vector<96x256xf32>
    %2 = arith.truncf %1 : vector<96x256xf32> to vector<96x256xbf16>
    %c0_2 = arith.constant 0 : index
    %c0_3 = arith.constant 0 : index
    %3 = vector.load %arg3[%c0_2, %c0_3] : memref<192x96xbf16, #tpu.memory_space<vmem>>, vector<192x96xbf16>
    %cst = arith.constant dense<0.000000e+00> : vector<192x256xf32>
    %4 = tpu.matmul %3, %2, %cst {dimension_numbers = #tpu.dot_dimension_numbers<[1], [0], [0], [1], [0, 0, 1, 1], [], []>} : vector<192x96xbf16>, vector<96x256xbf16>, vector<192x256xf32> -> vector<192x256xf32>
    %c0_4 = arith.constant 0 : index
    %c0_5 = arith.constant 0 : index
    %5 = vector.load %arg4[%c0_4, %c0_5] : memref<192x1xf32, #tpu.memory_space<vmem>>, vector<192x1xf32>
    %6 = vector.broadcast %5 : vector<192x1xf32> to vector<192x256xf32>
    %7 = arith.addf %4, %6 : vector<192x256xf32>
    %8 = arith.mulf %7, %7 : vector<192x256xf32>
    %9 = arith.mulf %7, %8 : vector<192x256xf32>
    %cst_6 = arith.constant 4.471500e-02 : f32
    %10 = vector.broadcast %cst_6 : f32 to vector<192x256xf32>
    %11 = arith.mulf %10, %9 : vector<192x256xf32>
    %12 = arith.addf %7, %11 : vector<192x256xf32>
    %cst_7 = arith.constant 0.797884583 : f32
    %13 = vector.broadcast %cst_7 : f32 to vector<192x256xf32>
    %14 = arith.mulf %13, %12 : vector<192x256xf32>
    %15 = math.tanh %14 : vector<192x256xf32>
    %cst_8 = arith.constant 1.000000e+00 : f32
    %16 = vector.broadcast %cst_8 : f32 to vector<192x256xf32>
    %17 = arith.addf %16, %15 : vector<192x256xf32>
    %cst_9 = arith.constant 5.000000e-01 : f32
    %18 = vector.broadcast %cst_9 : f32 to vector<192x256xf32>
    %19 = arith.mulf %18, %17 : vector<192x256xf32>
    %20 = arith.mulf %7, %19 : vector<192x256xf32>
    %c0_10 = arith.constant 0 : index
    %c0_11 = arith.constant 0 : index
    %21 = vector.load %arg5[%c0_10, %c0_11] : memref<8x192xbf16, #tpu.memory_space<vmem>>, vector<8x192xbf16>
    %22 = arith.truncf %20 : vector<192x256xf32> to vector<192x256xbf16>
    %cst_12 = arith.constant dense<0.000000e+00> : vector<8x256xf32>
    %23 = tpu.matmul %21, %22, %cst_12 {dimension_numbers = #tpu.dot_dimension_numbers<[1], [0], [0], [1], [0, 0, 1, 1], [], []>} : vector<8x192xbf16>, vector<192x256xbf16>, vector<8x256xf32> -> vector<8x256xf32>
    %c0_13 = arith.constant 0 : index
    %c0_14 = arith.constant 0 : index
    %24 = vector.load %arg6[%c0_13, %c0_14] : memref<8x1xf32, #tpu.memory_space<vmem>>, vector<8x1xf32>
    %25 = vector.broadcast %24 : vector<8x1xf32> to vector<8x256xf32>
    %26 = arith.addf %23, %25 : vector<8x256xf32>
    %27 = vector.extract_strided_slice %26 {offsets = [0, 0], sizes = [6, 256], strides = [1, 1]} : vector<8x256xf32> to vector<6x256xf32>
    %c0_15 = arith.constant 0 : index
    %c0_16 = arith.constant 0 : index
    %c0_17 = arith.constant 0 : index
    %28 = vector.load %arg7[%c0_15, %c0_16, %c0_17] : memref<1x6x256xf32, #tpu.memory_space<vmem>>, vector<1x6x256xf32>
    %29 = vector.shape_cast %28 : vector<1x6x256xf32> to vector<6x256xf32>
    %30 = vector.shape_cast %27 : vector<6x256xf32> to vector<1x6x256xf32>
    tpu.vector_store %arg7[%c0_15, %c0_16, %c0_17], %30 {strides = array<i32>} : memref<1x6x256xf32, #tpu.memory_space<vmem>>, vector<1x6x256xf32>,
    return
  }
  func.func @transform_0(%arg0: i32, %arg1: i32) -> (i32, i32, i32) {
    %c0_i32 = arith.constant 0 : i32
    %c0_i32_0 = arith.constant 0 : i32
    return %arg0, %c0_i32, %arg1 : i32, i32, i32
  }
  func.func @transform_1(%arg0: i32, %arg1: i32) -> (i32, i32) {
    %c0_i32 = arith.constant 0 : i32
    %c0_i32_0 = arith.constant 0 : i32
    %c0_i32_1 = arith.constant 0 : i32
    return %c0_i32, %c0_i32_0 : i32, i32
  }
  func.func @transform_2(%arg0: i32, %arg1: i32) -> (i32, i32) {
    %c0_i32 = arith.constant 0 : i32
    %c0_i32_0 = arith.constant 0 : i32
    %c0_i32_1 = arith.constant 0 : i32
    return %c0_i32, %c0_i32_0 : i32, i32
  }
  func.func @transform_3(%arg0: i32, %arg1: i32) -> (i32, i32) {
    %c0_i32 = arith.constant 0 : i32
    %c0_i32_0 = arith.constant 0 : i32
    %c0_i32_1 = arith.constant 0 : i32
    return %c0_i32, %c0_i32_0 : i32, i32
  }
  func.func @transform_4(%arg0: i32, %arg1: i32) -> (i32, i32) {
    %c0_i32 = arith.constant 0 : i32
    %c0_i32_0 = arith.constant 0 : i32
    %c0_i32_1 = arith.constant 0 : i32
    return %c0_i32, %c0_i32_0 : i32, i32
  }
  func.func @transform_5(%arg0: i32, %arg1: i32) -> (i32, i32, i32) {
    %c0_i32 = arith.constant 0 : i32
    %c0_i32_0 = arith.constant 0 : i32
    return %arg0, %c0_i32, %arg1 : i32, i32, i32
  }
}

</mosaic_0001>

<llo_original>
// kernel: last_layer_forward.1
$region0: #{last_layer_forward.1}
  #allocation0 [shape = 'u32[]', space=smem, size = 0x4, offset = 0x4, fixed_abs, tag = 'smem constant byte address 0x4 - core index']
  #allocation1 [shape = 'u32[144,128]{1,0:T(1,128)}', space=vmem, size = 0x12000, scoped, tag = 'internal scratch']
  %s0 = inlined_call_operand.vmem [shape: f32[2,96,256], index: 0, kind: input, shape index: {}]
  %s1 = inlined_call_operand.vmem [shape: bf16[192,96], index: 1, kind: input, shape index: {}]
  %s2 = inlined_call_operand.vmem [shape: f32[192,1], index: 2, kind: input, shape index: {}]
  %s3 = inlined_call_operand.vmem [shape: bf16[8,192], index: 3, kind: input, shape index: {}]
  %s4 = inlined_call_operand.vmem [shape: f32[8,1], index: 4, kind: input, shape index: {}]
  %s5 = inlined_call_operand.vmem [shape: f32[2,6,256], index: 5, kind: output, shape index: {}]
  %s6 = sld [smem:[#allocation0]]
  $region53: #{last_layer_forward.1} parent=0
    _
  %s8 = ssub.s32 1, %s6
  %s9 = scalar_select 0, %s8, %s6
  loop: start=0, step=1, limit=4
  $region2: #{last_layer_forward.1} parent=0 // loop_pre_header
    _
  $region3: #{last_layer_forward.1} parent=0 // loop_header
    %s11 = sphi 0, %s15
    %p12 = scmp.ge.s32.totalorder %s11, 4
    %s18 = sphi 0, %s30
    %s19 = sphi 0, %s26
    %s20 = sphi 0, %s18
    %s21 = sphi 0, %s19
    %s22 = sphi 0, %s20
    %s23 = sphi 0, %s21
    %s35 = sphi 0, %s37
    %s38 = sphi 0, %s35
    %s39 = sphi 0, %s38
    %s55 = sphi 0, %s39
    %s59 = sphi 0, %s59
    %s61 = sphi 0, %s59
    %s62 = sphi 0, %s61
    %s76 = sphi 0, %s62
    %s80 = sphi 0, %s80
    %s82 = sphi 0, %s80
    %s83 = sphi 0, %s82
    %s97 = sphi 0, %s83
    %s101 = sphi 0, %s101
    %s103 = sphi 0, %s101
    %s104 = sphi 0, %s103
    %s118 = sphi 0, %s104
    %s122 = sphi 0, %s122
    %s124 = sphi 0, %s122
    %s125 = sphi 0, %s124
    %s139 = sphi 0, %s125
    %s147 = sphi 0, %s149
    %s150 = sphi 0, %s147
    %s151 = sphi 0, %s150
    %s167 = sphi 0, %s151
  $region4: #{last_layer_forward.1} parent=0 // loop_header_branch
    %14 = sbr.rel (%p12) target = $region8
  $region5: #{last_layer_forward.1} parent=0 // loop_body
    %s16 = ssub.s32 %s11, 1
    %s17 = ssub.s32 %s11, 2
    %s24 = sadd.s32 1, %s19
    %p25 = scmp.ge.s32.totalorder %s24, 1
    %s26 = scalar_select %p25, 0, %s24
    %s27 = sadd.s32 1, %s18
    %s28 = scalar_select %p25, %s27, %s18
    %p29 = scmp.ge.s32.totalorder %s28, 2
    %s30 = scalar_select %p29, 0, %s28
    %s31 = ssub.s32 %s18, %s30
    %s32 = ssub.s32 %s19, %s26
    %s33 = sor.u32 %s31, %s32
    %p34 = scmp.eq.s32.totalorder %s33, 0
    %s36 = sadd.s32 %s35, 1
    %s37 = scalar_select %p34, %s35, %s36
    %p40 = pneg %p34
    %p41 = scmp.eq.s32.totalorder %s11, 1
    %p42 = por %p40, %p41
    %p43 = scmp.ne.s32.totalorder %s35, %s38
    %p44 = scmp.eq.s32.totalorder %s11, 0
    %p45 = por %p43, %p44
    %p46 = scmp.ne.s32.totalorder %s35, %s38
    %p47 = scmp.eq.s32.totalorder %s16, 1
    %p48 = por %p46, %p47
    %p49 = scmp.ne.s32.totalorder %s38, %s39
    %p50 = scmp.eq.s32.totalorder %s16, 0
    %p51 = por %p49, %p50
    %p52 = scmp.ne.s32.totalorder %s38, %s39
    %p53 = scmp.eq.s32.totalorder %s17, 1
    %p54 = por %p52, %p53
    %p56 = scmp.ne.s32.totalorder %s39, %s55
    %p57 = scmp.eq.s32.totalorder %s17, 0
    %p58 = por %p56, %p57
    %s60 = sadd.s32 %s59, 1
    %p63 = scmp.eq.s32.totalorder %s11, 1
    %p64 = scmp.ne.s32.totalorder %s59, %s61
    %p65 = scmp.eq.s32.totalorder %s11, 0
    %p66 = por %p64, %p65
    %p67 = scmp.ne.s32.totalorder %s59, %s61
    %p68 = scmp.eq.s32.totalorder %s16, 1
    %p69 = por %p67, %p68
    %p70 = scmp.ne.s32.totalorder %s61, %s62
    %p71 = scmp.eq.s32.totalorder %s16, 0
    %p72 = por %p70, %p71
    %p73 = scmp.ne.s32.totalorder %s61, %s62
    %p74 = scmp.eq.s32.totalorder %s17, 1
    %p75 = por %p73, %p74
    %p77 = scmp.ne.s32.totalorder %s62, %s76
    %p78 = scmp.eq.s32.totalorder %s17, 0
    %p79 = por %p77, %p78
    %s81 = sadd.s32 %s80, 1
    %p84 = scmp.eq.s32.totalorder %s11, 1
    %p85 = scmp.ne.s32.totalorder %s80, %s82
    %p86 = scmp.eq.s32.totalorder %s11, 0
    %p87 = por %p85, %p86
    %p88 = scmp.ne.s32.totalorder %s80, %s82
    %p89 = scmp.eq.s32.totalorder %s16, 1
    %p90 = por %p88, %p89
    %p91 = scmp.ne.s32.totalorder %s82, %s83
    %p92 = scmp.eq.s32.totalorder %s16, 0
    %p93 = por %p91, %p92
    %p94 = scmp.ne.s32.totalorder %s82, %s83
    %p95 = scmp.eq.s32.totalorder %s17, 1
    %p96 = por %p94, %p95
    %p98 = scmp.ne.s32.totalorder %s83, %s97
    %p99 = scmp.eq.s32.totalorder %s17, 0
    %p100 = por %p98, %p99
    %s102 = sadd.s32 %s101, 1
    %p105 = scmp.eq.s32.totalorder %s11, 1
    %p106 = scmp.ne.s32.totalorder %s101, %s103
    %p107 = scmp.eq.s32.totalorder %s11, 0
    %p108 = por %p106, %p107
    %p109 = scmp.ne.s32.totalorder %s101, %s103
    %p110 = scmp.eq.s32.totalorder %s16, 1
    %p111 = por %p109, %p110
    %p112 = scmp.ne.s32.totalorder %s103, %s104
    %p113 = scmp.eq.s32.totalorder %s16, 0
    %p114 = por %p112, %p113
    %p115 = scmp.ne.s32.totalorder %s103, %s104
    %p116 = scmp.eq.s32.totalorder %s17, 1
    %p117 = por %p115, %p116
    %p119 = scmp.ne.s32.totalorder %s104, %s118
    %p120 = scmp.eq.s32.totalorder %s17, 0
    %p121 = por %p119, %p120
    %s123 = sadd.s32 %s122, 1
    %p126 = scmp.eq.s32.totalorder %s11, 1
    %p127 = scmp.ne.s32.totalorder %s122, %s124
    %p128 = scmp.eq.s32.totalorder %s11, 0
    %p129 = por %p127, %p128
    %p130 = scmp.ne.s32.totalorder %s122, %s124
    %p131 = scmp.eq.s32.totalorder %s16, 1
    %p132 = por %p130, %p131
    %p133 = scmp.ne.s32.totalorder %s124, %s125
    %p134 = scmp.eq.s32.totalorder %s16, 0
    %p135 = por %p133, %p134
    %p136 = scmp.ne.s32.totalorder %s124, %s125
    %p137 = scmp.eq.s32.totalorder %s17, 1
    %p138 = por %p136, %p137
    %p140 = scmp.ne.s32.totalorder %s125, %s139
    %p141 = scmp.eq.s32.totalorder %s17, 0
    %p142 = por %p140, %p141
    %s143 = ssub.s32 %s18, %s30
    %s144 = ssub.s32 %s19, %s26
    %s145 = sor.u32 %s143, %s144
    %p146 = scmp.eq.s32.totalorder %s145, 0
    %s148 = sadd.s32 %s147, 1
    %s149 = scalar_select %p146, %s147, %s148
    %p152 = pneg %p146
    %p153 = scmp.eq.s32.totalorder %s11, 1
    %p154 = por %p152, %p153
    %p155 = scmp.ne.s32.totalorder %s147, %s150
    %p156 = scmp.eq.s32.totalorder %s11, 0
    %p157 = por %p155, %p156
    %p158 = scmp.ne.s32.totalorder %s147, %s150
    %p159 = scmp.eq.s32.totalorder %s16, 1
    %p160 = por %p158, %p159
    %p161 = scmp.ne.s32.totalorder %s150, %s151
    %p162 = scmp.eq.s32.totalorder %s16, 0
    %p163 = por %p161, %p162
    %p164 = scmp.ne.s32.totalorder %s150, %s151
    %p165 = scmp.eq.s32.totalorder %s17, 1
    %p166 = por %p164, %p165
    %p168 = scmp.ne.s32.totalorder %s151, %s167
    %p169 = scmp.eq.s32.totalorder %s17, 0
    %p170 = por %p168, %p169
    %p171 = scmp.le.s32.totalorder 1, %s11
    %p172 = scmp.lt.s32.totalorder %s11, 3
    %p173 = pnand %p171, %p172
    %p174 = pneg %p173
    // Predicated region
    $region9: #{last_layer_forward.1} parent=5 // pred_check
      _
    $region10: #{last_layer_forward.1} parent=5 // pred_check_branch
      %176 = sbr.rel (%p173) target = $region12
    $region11: #{last_layer_forward.1} parent=5 // pred_region
      %s177 = ssub.s32 %s11, 1
      // Predicated region
      $region13: #{last_layer_forward.1} parent=11 // pred_check
        %p178 = pneg %p72
      $region14: #{last_layer_forward.1} parent=11 // pred_check_branch
        %180 = sbr.rel (%p178) target = $region16
      $region15: #{last_layer_forward.1} parent=11 // pred_region
        _
      $region16: #{last_layer_forward.1} parent=11 // pred_fallthru
        _
      // Predicated region
      $region17: #{last_layer_forward.1} parent=11 // pred_check
        %p181 = pneg %p93
      $region18: #{last_layer_forward.1} parent=11 // pred_check_branch
        %183 = sbr.rel (%p181) target = $region20
      $region19: #{last_layer_forward.1} parent=11 // pred_region
        _
      $region20: #{last_layer_forward.1} parent=11 // pred_fallthru
        _
      // Predicated region
      $region21: #{last_layer_forward.1} parent=11 // pred_check
        %p184 = pneg %p114
      $region22: #{last_layer_forward.1} parent=11 // pred_check_branch
        %186 = sbr.rel (%p184) target = $region24
      $region23: #{last_layer_forward.1} parent=11 // pred_region
        _
      $region24: #{last_layer_forward.1} parent=11 // pred_fallthru
        _
      // Predicated region
      $region25: #{last_layer_forward.1} parent=11 // pred_check
        %p187 = pneg %p135
      $region26: #{last_layer_forward.1} parent=11 // pred_check_branch
        %189 = sbr.rel (%p187) target = $region28
      $region27: #{last_layer_forward.1} parent=11 // pred_region
        _
      $region28: #{last_layer_forward.1} parent=11 // pred_fallthru
        _
    $region12: #{last_layer_forward.1} parent=5 // pred_fallthru
      _
    %p190 = scmp.lt.s32.totalorder %s11, 2
    // Predicated region
    $region29: #{last_layer_forward.1} parent=5 // pred_check
      %p191 = pneg %p190
    $region30: #{last_layer_forward.1} parent=5 // pred_check_branch
      %193 = sbr.rel (%p191) target = $region32
    $region31: #{last_layer_forward.1} parent=5 // pred_region
      // Predicated region
      $region33: #{last_layer_forward.1} parent=31 // pred_check
        %p194 = pneg %p45
      $region34: #{last_layer_forward.1} parent=31 // pred_check_branch
        %196 = sbr.rel (%p194) target = $region36
      $region35: #{last_layer_forward.1} parent=31 // pred_region
        %s197 = smul.u32 2, %s19
        %p198 = scmp.lt.s32.totalorder %s18, 1
        %s199 = scalar_select %p198, %s18, 1
        %p200 = scmp.lt.s32.totalorder %s197, 1
        %s201 = scalar_select %p200, %s197, 1
        %s202 = smul.addr %s199, 24
        %s203 = sadd.s32 %s201, %s202
        %s204 = smul.addr %s203, 8
        %s205 = scalar_lea.vmem %s0, %s204
        %s206 = smul.u32 2, %s19
      $region36: #{last_layer_forward.1} parent=31 // pred_fallthru
        _
    $region32: #{last_layer_forward.1} parent=5 // pred_fallthru
      _
    %p207 = scmp.le.s32.totalorder 1, %s11
    %p208 = scmp.lt.s32.totalorder %s11, 3
    %p209 = pnand %p207, %p208
    %p210 = pneg %p209
    // Predicated region
    $region37: #{last_layer_forward.1} parent=5 // pred_check
      _
    $region38: #{last_layer_forward.1} parent=5 // pred_check_branch
      %212 = sbr.rel (%p209) target = $region40
    $region39: #{last_layer_forward.1} parent=5 // pred_region
      %s213 = ssub.s32 %s11, 1
      %s214 = smul.u32 2, %s21
      %p215 = scmp.lt.s32.totalorder %s20, 1
      %s216 = scalar_select %p215, %s20, 1
      %p217 = scmp.lt.s32.totalorder %s214, 1
      %s218 = scalar_select %p217, %s214, 1
      %s219 = smul.addr %s216, 24
      %s220 = sadd.s32 %s218, %s219
      %s221 = smul.addr %s220, 8
      %s222 = scalar_lea.vmem %s0, %s221
      %p223 = pneg %p51
      %p224 = pneg %p48
      %p225 = pneg %p72
      %p226 = pneg %p69
      %p227 = pneg %p93
      %p228 = pneg %p90
      %p229 = pneg %p114
      %p230 = pneg %p111
      %p231 = pneg %p135
      %p232 = pneg %p132
      %p233 = pneg %p163
      %p234 = pneg %p160
      %s235 = smul.u32 2, %s21
      %p236 = scmp.lt.s32.totalorder %s20, 1
      %s237 = scalar_select %p236, %s20, 1
      %p238 = scmp.lt.s32.totalorder %s235, 1
      %s239 = scalar_select %p238, %s235, 1
      %s240 = smul.addr %s237, 2
      %s241 = sadd.s32 %s239, %s240
      %s242 = smul.addr %s241, 8
      %s243 = scalar_lea.vmem %s5, %s242
      %s244 = smul.u32 2, %s21
      %p245 = scmp.lt.s32.totalorder %s20, 1
      %s246 = scalar_select %p245, %s20, 1
      %p247 = scmp.lt.s32.totalorder %s244, 1
      %s248 = scalar_select %p247, %s244, 1
      %s249 = smul.addr %s246, 24
      %s250 = sadd.s32 %s248, %s249
      %s251 = smul.addr %s250, 8
      %s252 = scalar_lea.vmem %s0, %s251
      %s253 = smul.u32 2, %s21
      %s254 = smul.u32 2, %s21
      %p255 = scmp.lt.s32.totalorder %s20, 1
      %s256 = scalar_select %p255, %s20, 1
      %p257 = scmp.lt.s32.totalorder %s254, 1
      %s258 = scalar_select %p257, %s254, 1
      %s259 = smul.addr %s256, 2
      %s260 = sadd.s32 %s258, %s259
      %s261 = smul.addr %s260, 8
      %s262 = scalar_lea.vmem %s5, %s261
      %s263 = smul.u32 2, %s21
      %v265 = vld [vmem:[%s252] sm:$0xff]
      %v266 = vld [vmem:[%s252 + $0x8] sm:$0xff]
      %v267 = vld [vmem:[%s252 + $0x10] sm:$0xff]
      %v268 = vld [vmem:[%s252 + $0x18] sm:$0xff]
      %v269 = vld [vmem:[%s252 + $0x20] sm:$0xff]
      %v270 = vld [vmem:[%s252 + $0x28] sm:$0xff]
      %v271 = vld [vmem:[%s252 + $0x30] sm:$0xff]
      %v272 = vld [vmem:[%s252 + $0x38] sm:$0xff]
      %v273 = vld [vmem:[%s252 + $0x40] sm:$0xff]
      %v274 = vld [vmem:[%s252 + $0x48] sm:$0xff]
      %v275 = vld [vmem:[%s252 + $0x50] sm:$0xff]
      %v276 = vld [vmem:[%s252 + $0x58] sm:$0xff]
      %v277 = vld [vmem:[%s252 + $0x60] sm:$0xff]
      %v278 = vld [vmem:[%s252 + $0x68] sm:$0xff]
      %v279 = vld [vmem:[%s252 + $0x70] sm:$0xff]
      %v280 = vld [vmem:[%s252 + $0x78] sm:$0xff]
      %v281 = vld [vmem:[%s252 + $0x80] sm:$0xff]
      %v282 = vld [vmem:[%s252 + $0x88] sm:$0xff]
      %v283 = vld [vmem:[%s252 + $0x90] sm:$0xff]
      %v284 = vld [vmem:[%s252 + $0x98] sm:$0xff]
      %v285 = vld [vmem:[%s252 + $0xa0] sm:$0xff]
      %v286 = vld [vmem:[%s252 + $0xa8] sm:$0xff]
      %v287 = vld [vmem:[%s252 + $0xb0] sm:$0xff]
      %v288 = vld [vmem:[%s252 + $0xb8] sm:$0xff]
      %v289 = vpack.c.bf16 %v267, %v265
      %v290 = vpack.c.bf16 %v268, %v266
      %v291 = vpack.c.bf16 %v271, %v269
      %v292 = vpack.c.bf16 %v272, %v270
      %v293 = vpack.c.bf16 %v275, %v273
      %v294 = vpack.c.bf16 %v276, %v274
      %v295 = vpack.c.bf16 %v279, %v277
      %v296 = vpack.c.bf16 %v280, %v278
      %v297 = vpack.c.bf16 %v283, %v281
      %v298 = vpack.c.bf16 %v284, %v282
      %v299 = vpack.c.bf16 %v287, %v285
      %v300 = vpack.c.bf16 %v288, %v286
      %v301 = vld [vmem:[%s1] sm:$0xf]
      %v302 = vld [vmem:[%s1 + $0x4] sm:$0xf]
      %v303 = vld [vmem:[%s1 + $0x8] sm:$0xf]
      %v304 = vld [vmem:[%s1 + $0xc] sm:$0xf]
      %v305 = vld [vmem:[%s1 + $0x10] sm:$0xf]
      %v306 = vld [vmem:[%s1 + $0x14] sm:$0xf]
      %v307 = vld [vmem:[%s1 + $0x18] sm:$0xf]
      %v308 = vld [vmem:[%s1 + $0x1c] sm:$0xf]
      %v309 = vld [vmem:[%s1 + $0x20] sm:$0xf]
      %v310 = vld [vmem:[%s1 + $0x24] sm:$0xf]
      %v311 = vld [vmem:[%s1 + $0x28] sm:$0xf]
      %v312 = vld [vmem:[%s1 + $0x2c] sm:$0xf]
      %v313 = vld [vmem:[%s1 + $0x30] sm:$0xf]
      %v314 = vld [vmem:[%s1 + $0x34] sm:$0xf]
      %v315 = vld [vmem:[%s1 + $0x38] sm:$0xf]
      %v316 = vld [vmem:[%s1 + $0x3c] sm:$0xf]
      %v317 = vld [vmem:[%s1 + $0x40] sm:$0xf]
      %v318 = vld [vmem:[%s1 + $0x44] sm:$0xf]
      %v319 = vld [vmem:[%s1 + $0x48] sm:$0xf]
      %v320 = vld [vmem:[%s1 + $0x4c] sm:$0xf]
      %v321 = vld [vmem:[%s1 + $0x50] sm:$0xf]
      %v322 = vld [vmem:[%s1 + $0x54] sm:$0xf]
      %v323 = vld [vmem:[%s1 + $0x58] sm:$0xf]
      %v324 = vld [vmem:[%s1 + $0x5c] sm:$0xf]
      %v325 = vld [vmem:[%s2] sm:$0xff]
      %v326 = vld [vmem:[%s2 + $0x8] sm:$0xff]
      %v327 = vld [vmem:[%s2 + $0x10] sm:$0xff]
      %v328 = vld [vmem:[%s2 + $0x18] sm:$0xff]
      %v329 = vld [vmem:[%s2 + $0x20] sm:$0xff]
      %v330 = vld [vmem:[%s2 + $0x28] sm:$0xff]
      %v331 = vld [vmem:[%s2 + $0x30] sm:$0xff]
      %v332 = vld [vmem:[%s2 + $0x38] sm:$0xff]
      %v333 = vld [vmem:[%s2 + $0x40] sm:$0xff]
      %v334 = vld [vmem:[%s2 + $0x48] sm:$0xff]
      %v335 = vld [vmem:[%s2 + $0x50] sm:$0xff]
      %v336 = vld [vmem:[%s2 + $0x58] sm:$0xff]
      %v337 = vld [vmem:[%s2 + $0x60] sm:$0xff]
      %v338 = vld [vmem:[%s2 + $0x68] sm:$0xff]
      %v339 = vld [vmem:[%s2 + $0x70] sm:$0xff]
      %v340 = vld [vmem:[%s2 + $0x78] sm:$0xff]
      %v341 = vld [vmem:[%s2 + $0x80] sm:$0xff]
      %v342 = vld [vmem:[%s2 + $0x88] sm:$0xff]
      %v343 = vld [vmem:[%s2 + $0x90] sm:$0xff]
      %v344 = vld [vmem:[%s2 + $0x98] sm:$0xff]
      %v345 = vld [vmem:[%s2 + $0xa0] sm:$0xff]
      %v346 = vld [vmem:[%s2 + $0xa8] sm:$0xff]
      %v347 = vld [vmem:[%s2 + $0xb0] sm:$0xff]
      %v348 = vld [vmem:[%s2 + $0xb8] sm:$0xff]
      %350 = vset.pattern.permute.xlu0 0
      %351 = vperm.xlu0 %350, %v325
      %v352 = vpop.permute.xlu0 %351
      %355 = vset.pattern.permute.xlu0 0
      %356 = vperm.xlu0 %355, %v326
      %v357 = vpop.permute.xlu0 %356
      %360 = vset.pattern.permute.xlu0 0
      %361 = vperm.xlu0 %360, %v327
      %v362 = vpop.permute.xlu0 %361
      %365 = vset.pattern.permute.xlu0 0
      %366 = vperm.xlu0 %365, %v328
      %v367 = vpop.permute.xlu0 %366
      %370 = vset.pattern.permute.xlu0 0
      %371 = vperm.xlu0 %370, %v329
      %v372 = vpop.permute.xlu0 %371
      %375 = vset.pattern.permute.xlu0 0
      %376 = vperm.xlu0 %375, %v330
      %v377 = vpop.permute.xlu0 %376
      %380 = vset.pattern.permute.xlu0 0
      %381 = vperm.xlu0 %380, %v331
      %v382 = vpop.permute.xlu0 %381
      %385 = vset.pattern.permute.xlu0 0
      %386 = vperm.xlu0 %385, %v332
      %v387 = vpop.permute.xlu0 %386
      %390 = vset.pattern.permute.xlu0 0
      %391 = vperm.xlu0 %390, %v333
      %v392 = vpop.permute.xlu0 %391
      %395 = vset.pattern.permute.xlu0 0
      %396 = vperm.xlu0 %395, %v334
      %v397 = vpop.permute.xlu0 %396
      %400 = vset.pattern.permute.xlu0 0
      %401 = vperm.xlu0 %400, %v335
      %v402 = vpop.permute.xlu0 %401
      %405 = vset.pattern.permute.xlu0 0
      %406 = vperm.xlu0 %405, %v336
      %v407 = vpop.permute.xlu0 %406
      %410 = vset.pattern.permute.xlu0 0
      %411 = vperm.xlu0 %410, %v337
      %v412 = vpop.permute.xlu0 %411
      %415 = vset.pattern.permute.xlu0 0
      %416 = vperm.xlu0 %415, %v338
      %v417 = vpop.permute.xlu0 %416
      %420 = vset.pattern.permute.xlu0 0
      %421 = vperm.xlu0 %420, %v339
      %v422 = vpop.permute.xlu0 %421
      %425 = vset.pattern.permute.xlu0 0
      %426 = vperm.xlu0 %425, %v340
      %v427 = vpop.permute.xlu0 %426
      %430 = vset.pattern.permute.xlu0 0
      %431 = vperm.xlu0 %430, %v341
      %v432 = vpop.permute.xlu0 %431
      %435 = vset.pattern.permute.xlu0 0
      %436 = vperm.xlu0 %435, %v342
      %v437 = vpop.permute.xlu0 %436
      %440 = vset.pattern.permute.xlu0 0
      %441 = vperm.xlu0 %440, %v343
      %v442 = vpop.permute.xlu0 %441
      %445 = vset.pattern.permute.xlu0 0
      %446 = vperm.xlu0 %445, %v344
      %v447 = vpop.permute.xlu0 %446
      %450 = vset.pattern.permute.xlu0 0
      %451 = vperm.xlu0 %450, %v345
      %v452 = vpop.permute.xlu0 %451
      %455 = vset.pattern.permute.xlu0 0
      %456 = vperm.xlu0 %455, %v346
      %v457 = vpop.permute.xlu0 %456
      %460 = vset.pattern.permute.xlu0 0
      %461 = vperm.xlu0 %460, %v347
      %v462 = vpop.permute.xlu0 %461
      %465 = vset.pattern.permute.xlu0 0
      %466 = vperm.xlu0 %465, %v348
      %v467 = vpop.permute.xlu0 %466
      %v493 = vunpack.c.l.b16 %v301
      %v494 = vunpack.c.l.b16 %v302
      %v495 = vunpack.c.l.b16 %v303
      %v496 = vunpack.c.l.b16 %v304
      %v497 = vunpack.c.l.b16 %v305
      %v498 = vunpack.c.l.b16 %v306
      %v499 = vunpack.c.l.b16 %v307
      %v500 = vunpack.c.l.b16 %v308
      %v501 = vunpack.c.l.b16 %v309
      %v502 = vunpack.c.l.b16 %v310
      %v503 = vunpack.c.l.b16 %v311
      %v504 = vunpack.c.l.b16 %v312
      %v505 = vunpack.c.l.b16 %v313
      %v506 = vunpack.c.l.b16 %v314
      %v507 = vunpack.c.l.b16 %v315
      %v508 = vunpack.c.l.b16 %v316
      %v509 = vunpack.c.l.b16 %v317
      %v510 = vunpack.c.l.b16 %v318
      %v511 = vunpack.c.l.b16 %v319
      %v512 = vunpack.c.l.b16 %v320
      %v513 = vunpack.c.l.b16 %v321
      %v514 = vunpack.c.l.b16 %v322
      %v515 = vunpack.c.l.b16 %v323
      %v516 = vunpack.c.l.b16 %v324
      %v517 = vpack.c.b16 %v494, %v493
      %v518 = vpack.c.b16 %v496, %v495
      %v519 = vpack.c.b16 %v498, %v497
      %v520 = vpack.c.b16 %v500, %v499
      %v521 = vpack.c.b16 %v502, %v501
      %v522 = vpack.c.b16 %v504, %v503
      %v523 = vpack.c.b16 %v506, %v505
      %v524 = vpack.c.b16 %v508, %v507
      %v525 = vpack.c.b16 %v510, %v509
      %v526 = vpack.c.b16 %v512, %v511
      %v527 = vpack.c.b16 %v514, %v513
      %v528 = vpack.c.b16 %v516, %v515
      %vm529 = vcmask 785408
      %v531 = vsel %vm529, %v517, 0
      %v534 = vsel %vm529, %v518, 0
      %v537 = vsel %vm529, %v519, 0
      %v540 = vsel %vm529, %v520, 0
      %v543 = vsel %vm529, %v521, 0
      %v546 = vsel %vm529, %v522, 0
      %v549 = vsel %vm529, %v523, 0
      %v552 = vsel %vm529, %v524, 0
      %v555 = vsel %vm529, %v525, 0
      %v558 = vsel %vm529, %v526, 0
      %v561 = vsel %vm529, %v527, 0
      %v564 = vsel %vm529, %v528, 0
      %566 = vmatprep.subr.bf16.mxu0 %v290
      %567 = vmatpush1.bf16.msra.mxu0 %v289
      %568 = vmatprep.subr.bf16.mxu0 %v292
      %569 = vmatpush1.bf16.msra.mxu0 %v291
      %570 = vmatprep.subr.bf16.mxu0 %v294
      %571 = vmatpush1.bf16.msra.mxu0 %v293
      %572 = vmatprep.subr.bf16.mxu0 %v296
      %573 = vmatpush1.bf16.msra.mxu0 %v295
      %574 = vmatprep.subr.bf16.mxu0 %v298
      %575 = vmatpush1.bf16.msra.mxu0 %v297
      %576 = vmatprep.subr.bf16.mxu0 %v300
      %577 = vmatpush1.bf16.msra.mxu0 %v299
      %578 = vmatprep.subr.bf16.mxu0 0
      %579 = vmatpush1.bf16.msra.mxu0 0
      %580 = vmatprep.subr.bf16.mxu0 0
      %581 = vmatpush1.bf16.msra.mxu0 0
      %582 = vmatprep.subr.bf16.mxu0 0
      %583 = vmatpush1.bf16.msra.mxu0 0
      %584 = vmatprep.subr.bf16.mxu0 0
      %585 = vmatpush1.bf16.msra.mxu0 0
      %586 = vmatprep.subr.bf16.mxu0 0
      %587 = vmatpush1.bf16.msra.mxu0 0
      %588 = vmatprep.subr.bf16.mxu0 0
      %589 = vmatpush1.bf16.msra.mxu0 0
      %590 = vmatprep.subr.bf16.mxu0 0
      %591 = vmatpush1.bf16.msra.mxu0 0
      %592 = vmatprep.subr.bf16.mxu0 0
      %593 = vmatpush1.bf16.msra.mxu0 0
      %594 = vmatprep.subr.bf16.mxu0 0
      %595 = vmatpush1.bf16.msra.mxu0 0
      %596 = vmatprep.subr.bf16.mxu0 0
      %597 = vmatpush1.bf16.msra.mxu0 0
      %598 = vmatprep.mubr.bf16.mxu0 0
      %599 = vmatmul.mubr.bf16.gmra.mrb[0].mxu0 %v531
      %v600 = vpop.f32.mrb[0].mxu0
      %v601 = vadd.f32 %v352, %v600
      %v602 = vpop.f32.mrb[0].mxu0
      %v603 = vadd.f32 %v352, %v602
      %v604 = vpop.f32.mrb[0].mxu0
      %v605 = vadd.f32 %v357, %v604
      %v606 = vpop.f32.mrb[0].mxu0
      %v607 = vadd.f32 %v357, %v606
      %608 = vmatprep.mubr.bf16.mxu0 0
      %609 = vmatmul.mubr.bf16.gmra.mrb[0].mxu0 %v534
      %v610 = vpop.f32.mrb[0].mxu0
      %v611 = vadd.f32 %v362, %v610
      %v612 = vpop.f32.mrb[0].mxu0
      %v613 = vadd.f32 %v362, %v612
      %v614 = vpop.f32.mrb[0].mxu0
      %v615 = vadd.f32 %v367, %v614
      %v616 = vpop.f32.mrb[0].mxu0
      %v617 = vadd.f32 %v367, %v616
      %618 = vmatprep.mubr.bf16.mxu0 0
      %619 = vmatmul.mubr.bf16.gmra.mrb[0].mxu0 %v537
      %v620 = vpop.f32.mrb[0].mxu0
      %v621 = vadd.f32 %v372, %v620
      %v622 = vpop.f32.mrb[0].mxu0
      %v623 = vadd.f32 %v372, %v622
      %v624 = vpop.f32.mrb[0].mxu0
      %v625 = vadd.f32 %v377, %v624
      %v626 = vpop.f32.mrb[0].mxu0
      %v627 = vadd.f32 %v377, %v626
      %628 = vmatprep.mubr.bf16.mxu0 0
      %629 = vmatmul.mubr.bf16.gmra.mrb[0].mxu0 %v540
      %v630 = vpop.f32.mrb[0].mxu0
      %v631 = vadd.f32 %v382, %v630
      %v632 = vpop.f32.mrb[0].mxu0
      %v633 = vadd.f32 %v382, %v632
      %v634 = vpop.f32.mrb[0].mxu0
      %v635 = vadd.f32 %v387, %v634
      %v636 = vpop.f32.mrb[0].mxu0
      %v637 = vadd.f32 %v387, %v636
      %638 = vmatprep.mubr.bf16.mxu0 0
      %639 = vmatmul.mubr.bf16.gmra.mrb[0].mxu0 %v543
      %v640 = vpop.f32.mrb[0].mxu0
      %v641 = vadd.f32 %v392, %v640
      %v642 = vpop.f32.mrb[0].mxu0
      %v643 = vadd.f32 %v392, %v642
      %v644 = vpop.f32.mrb[0].mxu0
      %v645 = vadd.f32 %v397, %v644
      %v646 = vpop.f32.mrb[0].mxu0
      %v647 = vadd.f32 %v397, %v646
      %648 = vmatprep.mubr.bf16.mxu0 0
      %649 = vmatmul.mubr.bf16.gmra.mrb[0].mxu0 %v546
      %v650 = vpop.f32.mrb[0].mxu0
      %v651 = vadd.f32 %v402, %v650
      %v652 = vpop.f32.mrb[0].mxu0
      %v653 = vadd.f32 %v402, %v652
      %v654 = vpop.f32.mrb[0].mxu0
      %v655 = vadd.f32 %v407, %v654
      %v656 = vpop.f32.mrb[0].mxu0
      %v657 = vadd.f32 %v407, %v656
      %658 = vmatprep.mubr.bf16.mxu0 0
      %659 = vmatmul.mubr.bf16.gmra.mrb[0].mxu0 %v549
      %v660 = vpop.f32.mrb[0].mxu0
      %v661 = vadd.f32 %v412, %v660
      %v662 = vpop.f32.mrb[0].mxu0
      %v663 = vadd.f32 %v412, %v662
      %v664 = vpop.f32.mrb[0].mxu0
      %v665 = vadd.f32 %v417, %v664
      %v666 = vpop.f32.mrb[0].mxu0
      %v667 = vadd.f32 %v417, %v666
      %668 = vmatprep.mubr.bf16.mxu0 0
      %669 = vmatmul.mubr.bf16.gmra.mrb[0].mxu0 %v552
      %v670 = vpop.f32.mrb[0].mxu0
      %v671 = vadd.f32 %v422, %v670
      %v672 = vpop.f32.mrb[0].mxu0
      %v673 = vadd.f32 %v422, %v672
      %v674 = vpop.f32.mrb[0].mxu0
      %v675 = vadd.f32 %v427, %v674
      %v676 = vpop.f32.mrb[0].mxu0
      %v677 = vadd.f32 %v427, %v676
      %678 = vmatprep.mubr.bf16.mxu0 0
      %679 = vmatmul.mubr.bf16.gmra.mrb[0].mxu0 %v555
      %v680 = vpop.f32.mrb[0].mxu0
      %v681 = vadd.f32 %v432, %v680
      %v682 = vpop.f32.mrb[0].mxu0
      %v683 = vadd.f32 %v432, %v682
      %v684 = vpop.f32.mrb[0].mxu0
      %v685 = vadd.f32 %v437, %v684
      %v686 = vpop.f32.mrb[0].mxu0
      %v687 = vadd.f32 %v437, %v686
      %688 = vmatprep.mubr.bf16.mxu0 0
      %689 = vmatmul.mubr.bf16.gmra.mrb[0].mxu0 %v558
      %v690 = vpop.f32.mrb[0].mxu0
      %v691 = vadd.f32 %v442, %v690
      %v692 = vpop.f32.mrb[0].mxu0
      %v693 = vadd.f32 %v442, %v692
      %v694 = vpop.f32.mrb[0].mxu0
      %v695 = vadd.f32 %v447, %v694
      %v696 = vpop.f32.mrb[0].mxu0
      %v697 = vadd.f32 %v447, %v696
      %698 = vmatprep.mubr.bf16.mxu0 0
      %699 = vmatmul.mubr.bf16.gmra.mrb[0].mxu0 %v561
      %v700 = vpop.f32.mrb[0].mxu0
      %v701 = vadd.f32 %v452, %v700
      %v702 = vpop.f32.mrb[0].mxu0
      %v703 = vadd.f32 %v452, %v702
      %v704 = vpop.f32.mrb[0].mxu0
      %v705 = vadd.f32 %v457, %v704
      %v706 = vpop.f32.mrb[0].mxu0
      %v707 = vadd.f32 %v457, %v706
      %708 = vmatprep.mubr.bf16.mxu0 0
      %709 = vmatmul.mubr.bf16.gmra.mrb[0].mxu0 %v564
      %v710 = vpop.f32.mrb[0].mxu0
      %v711 = vadd.f32 %v462, %v710
      %v712 = vpop.f32.mrb[0].mxu0
      %v713 = vadd.f32 %v462, %v712
      %v714 = vpop.f32.mrb[0].mxu0
      %v715 = vadd.f32 %v467, %v714
      %v716 = vpop.f32.mrb[0].mxu0
      %v717 = vadd.f32 %v467, %v716
      %718 = vdwg.mxu0
      %v719 = vmul.f32 %v601, %v601
      %v720 = vmul.f32 %v603, %v603
      %v721 = vmul.f32 %v605, %v605
      %v722 = vmul.f32 %v607, %v607
      %v723 = vmul.f32 %v611, %v611
      %v724 = vmul.f32 %v613, %v613
      %v725 = vmul.f32 %v615, %v615
      %v726 = vmul.f32 %v617, %v617
      %v727 = vmul.f32 %v621, %v621
      %v728 = vmul.f32 %v623, %v623
      %v729 = vmul.f32 %v625, %v625
      %v730 = vmul.f32 %v627, %v627
      %v731 = vmul.f32 %v631, %v631
      %v732 = vmul.f32 %v633, %v633
      %v733 = vmul.f32 %v635, %v635
      %v734 = vmul.f32 %v637, %v637
      %v735 = vmul.f32 %v641, %v641
      %v736 = vmul.f32 %v643, %v643
      %v737 = vmul.f32 %v645, %v645
      %v738 = vmul.f32 %v647, %v647
      %v739 = vmul.f32 %v651, %v651
      %v740 = vmul.f32 %v653, %v653
      %v741 = vmul.f32 %v655, %v655
      %v742 = vmul.f32 %v657, %v657
      %v743 = vmul.f32 %v661, %v661
      %v744 = vmul.f32 %v663, %v663
      %v745 = vmul.f32 %v665, %v665
      %v746 = vmul.f32 %v667, %v667
      %v747 = vmul.f32 %v671, %v671
      %v748 = vmul.f32 %v673, %v673
      %v749 = vmul.f32 %v675, %v675
      %v750 = vmul.f32 %v677, %v677
      %v751 = vmul.f32 %v681, %v681
      %v752 = vmul.f32 %v683, %v683
      %v753 = vmul.f32 %v685, %v685
      %v754 = vmul.f32 %v687, %v687
      %v755 = vmul.f32 %v691, %v691
      %v756 = vmul.f32 %v693, %v693
      %v757 = vmul.f32 %v695, %v695
      %v758 = vmul.f32 %v697, %v697
      %v759 = vmul.f32 %v701, %v701
      %v760 = vmul.f32 %v703, %v703
      %v761 = vmul.f32 %v705, %v705
      %v762 = vmul.f32 %v707, %v707
      %v763 = vmul.f32 %v711, %v711
      %v764 = vmul.f32 %v713, %v713
      %v765 = vmul.f32 %v715, %v715
      %v766 = vmul.f32 %v717, %v717
      %v767 = vmul.f32 %v601, %v719
      %v768 = vmul.f32 %v603, %v720
      %v769 = vmul.f32 %v605, %v721
      %v770 = vmul.f32 %v607, %v722
      %v771 = vmul.f32 %v611, %v723
      %v772 = vmul.f32 %v613, %v724
      %v773 = vmul.f32 %v615, %v725
      %v774 = vmul.f32 %v617, %v726
      %v775 = vmul.f32 %v621, %v727
      %v776 = vmul.f32 %v623, %v728
      %v777 = vmul.f32 %v625, %v729
      %v778 = vmul.f32 %v627, %v730
      %v779 = vmul.f32 %v631, %v731
      %v780 = vmul.f32 %v633, %v732
      %v781 = vmul.f32 %v635, %v733
      %v782 = vmul.f32 %v637, %v734
      %v783 = vmul.f32 %v641, %v735
      %v784 = vmul.f32 %v643, %v736
      %v785 = vmul.f32 %v645, %v737
      %v786 = vmul.f32 %v647, %v738
      %v787 = vmul.f32 %v651, %v739
      %v788 = vmul.f32 %v653, %v740
      %v789 = vmul.f32 %v655, %v741
      %v790 = vmul.f32 %v657, %v742
      %v791 = vmul.f32 %v661, %v743
      %v792 = vmul.f32 %v663, %v744
      %v793 = vmul.f32 %v665, %v745
      %v794 = vmul.f32 %v667, %v746
      %v795 = vmul.f32 %v671, %v747
      %v796 = vmul.f32 %v673, %v748
      %v797 = vmul.f32 %v675, %v749
      %v798 = vmul.f32 %v677, %v750
      %v799 = vmul.f32 %v681, %v751
      %v800 = vmul.f32 %v683, %v752
      %v801 = vmul.f32 %v685, %v753
      %v802 = vmul.f32 %v687, %v754
      %v803 = vmul.f32 %v691, %v755
      %v804 = vmul.f32 %v693, %v756
      %v805 = vmul.f32 %v695, %v757
      %v806 = vmul.f32 %v697, %v758
      %v807 = vmul.f32 %v701, %v759
      %v808 = vmul.f32 %v703, %v760
      %v809 = vmul.f32 %v705, %v761
      %v810 = vmul.f32 %v707, %v762
      %v811 = vmul.f32 %v711, %v763
      %v812 = vmul.f32 %v713, %v764
      %v813 = vmul.f32 %v715, %v765
      %v814 = vmul.f32 %v717, %v766
      %v815 = vmul.f32 %v767, 0.044715
      %v816 = vmul.f32 %v768, 0.044715
      %v817 = vmul.f32 %v769, 0.044715
      %v818 = vmul.f32 %v770, 0.044715
      %v819 = vmul.f32 %v771, 0.044715
      %v820 = vmul.f32 %v772, 0.044715
      %v821 = vmul.f32 %v773, 0.044715
      %v822 = vmul.f32 %v774, 0.044715
      %v823 = vmul.f32 %v775, 0.044715
      %v824 = vmul.f32 %v776, 0.044715
      %v825 = vmul.f32 %v777, 0.044715
      %v826 = vmul.f32 %v778, 0.044715
      %v827 = vmul.f32 %v779, 0.044715
      %v828 = vmul.f32 %v780, 0.044715
      %v829 = vmul.f32 %v781, 0.044715
      %v830 = vmul.f32 %v782, 0.044715
      %v831 = vmul.f32 %v783, 0.044715
      %v832 = vmul.f32 %v784, 0.044715
      %v833 = vmul.f32 %v785, 0.044715
      %v834 = vmul.f32 %v786, 0.044715
      %v835 = vmul.f32 %v787, 0.044715
      %v836 = vmul.f32 %v788, 0.044715
      %v837 = vmul.f32 %v789, 0.044715
      %v838 = vmul.f32 %v790, 0.044715
      %v839 = vmul.f32 %v791, 0.044715
      %v840 = vmul.f32 %v792, 0.044715
      %v841 = vmul.f32 %v793, 0.044715
      %v842 = vmul.f32 %v794, 0.044715
      %v843 = vmul.f32 %v795, 0.044715
      %v844 = vmul.f32 %v796, 0.044715
      %v845 = vmul.f32 %v797, 0.044715
      %v846 = vmul.f32 %v798, 0.044715
      %v847 = vmul.f32 %v799, 0.044715
      %v848 = vmul.f32 %v800, 0.044715
      %v849 = vmul.f32 %v801, 0.044715
      %v850 = vmul.f32 %v802, 0.044715
      %v851 = vmul.f32 %v803, 0.044715
      %v852 = vmul.f32 %v804, 0.044715
      %v853 = vmul.f32 %v805, 0.044715
      %v854 = vmul.f32 %v806, 0.044715
      %v855 = vmul.f32 %v807, 0.044715
      %v856 = vmul.f32 %v808, 0.044715
      %v857 = vmul.f32 %v809, 0.044715
      %v858 = vmul.f32 %v810, 0.044715
      %v859 = vmul.f32 %v811, 0.044715
      %v860 = vmul.f32 %v812, 0.044715
      %v861 = vmul.f32 %v813, 0.044715
      %v862 = vmul.f32 %v814, 0.044715
      %v863 = vadd.f32 %v601, %v815
      %v864 = vadd.f32 %v603, %v816
      %v865 = vadd.f32 %v605, %v817
      %v866 = vadd.f32 %v607, %v818
      %v867 = vadd.f32 %v611, %v819
      %v868 = vadd.f32 %v613, %v820
      %v869 = vadd.f32 %v615, %v821
      %v870 = vadd.f32 %v617, %v822
      %v871 = vadd.f32 %v621, %v823
      %v872 = vadd.f32 %v623, %v824
      %v873 = vadd.f32 %v625, %v825
      %v874 = vadd.f32 %v627, %v826
      %v875 = vadd.f32 %v631, %v827
      %v876 = vadd.f32 %v633, %v828
      %v877 = vadd.f32 %v635, %v829
      %v878 = vadd.f32 %v637, %v830
      %v879 = vadd.f32 %v641, %v831
      %v880 = vadd.f32 %v643, %v832
      %v881 = vadd.f32 %v645, %v833
      %v882 = vadd.f32 %v647, %v834
      %v883 = vadd.f32 %v651, %v835
      %v884 = vadd.f32 %v653, %v836
      %v885 = vadd.f32 %v655, %v837
      %v886 = vadd.f32 %v657, %v838
      %v887 = vadd.f32 %v661, %v839
      %v888 = vadd.f32 %v663, %v840
      %v889 = vadd.f32 %v665, %v841
      %v890 = vadd.f32 %v667, %v842
      %v891 = vadd.f32 %v671, %v843
      %v892 = vadd.f32 %v673, %v844
      %v893 = vadd.f32 %v675, %v845
      %v894 = vadd.f32 %v677, %v846
      %v895 = vadd.f32 %v681, %v847
      %v896 = vadd.f32 %v683, %v848
      %v897 = vadd.f32 %v685, %v849
      %v898 = vadd.f32 %v687, %v850
      %v899 = vadd.f32 %v691, %v851
      %v900 = vadd.f32 %v693, %v852
      %v901 = vadd.f32 %v695, %v853
      %v902 = vadd.f32 %v697, %v854
      %v903 = vadd.f32 %v701, %v855
      %v904 = vadd.f32 %v703, %v856
      %v905 = vadd.f32 %v705, %v857
      %v906 = vadd.f32 %v707, %v858
      %v907 = vadd.f32 %v711, %v859
      %v908 = vadd.f32 %v713, %v860
      %v909 = vadd.f32 %v715, %v861
      %v910 = vadd.f32 %v717, %v862
      %v911 = vmul.f32 %v863, 0.7978846
      %v912 = vmul.f32 %v864, 0.7978846
      %v913 = vmul.f32 %v865, 0.7978846
      %v914 = vmul.f32 %v866, 0.7978846
      %v915 = vmul.f32 %v867, 0.7978846
      %v916 = vmul.f32 %v868, 0.7978846
      %v917 = vmul.f32 %v869, 0.7978846
      %v918 = vmul.f32 %v870, 0.7978846
      %v919 = vmul.f32 %v871, 0.7978846
      %v920 = vmul.f32 %v872, 0.7978846
      %v921 = vmul.f32 %v873, 0.7978846
      %v922 = vmul.f32 %v874, 0.7978846
      %v923 = vmul.f32 %v875, 0.7978846
      %v924 = vmul.f32 %v876, 0.7978846
      %v925 = vmul.f32 %v877, 0.7978846
      %v926 = vmul.f32 %v878, 0.7978846
      %v927 = vmul.f32 %v879, 0.7978846
      %v928 = vmul.f32 %v880, 0.7978846
      %v929 = vmul.f32 %v881, 0.7978846
      %v930 = vmul.f32 %v882, 0.7978846
      %v931 = vmul.f32 %v883, 0.7978846
      %v932 = vmul.f32 %v884, 0.7978846
      %v933 = vmul.f32 %v885, 0.7978846
      %v934 = vmul.f32 %v886, 0.7978846
      %v935 = vmul.f32 %v887, 0.7978846
      %v936 = vmul.f32 %v888, 0.7978846
      %v937 = vmul.f32 %v889, 0.7978846
      %v938 = vmul.f32 %v890, 0.7978846
      %v939 = vmul.f32 %v891, 0.7978846
      %v940 = vmul.f32 %v892, 0.7978846
      %v941 = vmul.f32 %v893, 0.7978846
      %v942 = vmul.f32 %v894, 0.7978846
      %v943 = vmul.f32 %v895, 0.7978846
      %v944 = vmul.f32 %v896, 0.7978846
      %v945 = vmul.f32 %v897, 0.7978846
      %v946 = vmul.f32 %v898, 0.7978846
      %v947 = vmul.f32 %v899, 0.7978846
      %v948 = vmul.f32 %v900, 0.7978846
      %v949 = vmul.f32 %v901, 0.7978846
      %v950 = vmul.f32 %v902, 0.7978846
      %v951 = vmul.f32 %v903, 0.7978846
      %v952 = vmul.f32 %v904, 0.7978846
      %v953 = vmul.f32 %v905, 0.7978846
      %v954 = vmul.f32 %v906, 0.7978846
      %v955 = vmul.f32 %v907, 0.7978846
      %v956 = vmul.f32 %v908, 0.7978846
      %v957 = vmul.f32 %v909, 0.7978846
      %v958 = vmul.f32 %v910, 0.7978846
      %v959 = vtanh.pop %v911
      %v960 = vtanh.pop %v912
      %v961 = vtanh.pop %v913
      %v962 = vtanh.pop %v914
      %v963 = vtanh.pop %v915
      %v964 = vtanh.pop %v916
      %v965 = vtanh.pop %v917
      %v966 = vtanh.pop %v918
      %v967 = vtanh.pop %v919
      %v968 = vtanh.pop %v920
      %v969 = vtanh.pop %v921
      %v970 = vtanh.pop %v922
      %v971 = vtanh.pop %v923
      %v972 = vtanh.pop %v924
      %v973 = vtanh.pop %v925
      %v974 = vtanh.pop %v926
      %v975 = vtanh.pop %v927
      %v976 = vtanh.pop %v928
      %v977 = vtanh.pop %v929
      %v978 = vtanh.pop %v930
      %v979 = vtanh.pop %v931
      %v980 = vtanh.pop %v932
      %v981 = vtanh.pop %v933
      %v982 = vtanh.pop %v934
      %v983 = vtanh.pop %v935
      %v984 = vtanh.pop %v936
      %v985 = vtanh.pop %v937
      %v986 = vtanh.pop %v938
      %v987 = vtanh.pop %v939
      %v988 = vtanh.pop %v940
      %v989 = vtanh.pop %v941
      %v990 = vtanh.pop %v942
      %v991 = vtanh.pop %v943
      %v992 = vtanh.pop %v944
      %v993 = vtanh.pop %v945
      %v994 = vtanh.pop %v946
      %v995 = vtanh.pop %v947
      %v996 = vtanh.pop %v948
      %v997 = vtanh.pop %v949
      %v998 = vtanh.pop %v950
      %v999 = vtanh.pop %v951
      %v1000 = vtanh.pop %v952
      %v1001 = vtanh.pop %v953
      %v1002 = vtanh.pop %v954
      %v1003 = vtanh.pop %v955
      %v1004 = vtanh.pop %v956
      %v1005 = vtanh.pop %v957
      %v1006 = vtanh.pop %v958
      %v1007 = vadd.f32 %v959, 1.0
      %v1008 = vadd.f32 %v960, 1.0
      %v1009 = vadd.f32 %v961, 1.0
      %v1010 = vadd.f32 %v962, 1.0
      %v1011 = vadd.f32 %v963, 1.0
      %v1012 = vadd.f32 %v964, 1.0
      %v1013 = vadd.f32 %v965, 1.0
      %v1014 = vadd.f32 %v966, 1.0
      %v1015 = vadd.f32 %v967, 1.0
      %v1016 = vadd.f32 %v968, 1.0
      %v1017 = vadd.f32 %v969, 1.0
      %v1018 = vadd.f32 %v970, 1.0
      %v1019 = vadd.f32 %v971, 1.0
      %v1020 = vadd.f32 %v972, 1.0
      %v1021 = vadd.f32 %v973, 1.0
      %v1022 = vadd.f32 %v974, 1.0
      %v1023 = vadd.f32 %v975, 1.0
      %v1024 = vadd.f32 %v976, 1.0
      %v1025 = vadd.f32 %v977, 1.0
      %v1026 = vadd.f32 %v978, 1.0
      %v1027 = vadd.f32 %v979, 1.0
      %v1028 = vadd.f32 %v980, 1.0
      %v1029 = vadd.f32 %v981, 1.0
      %v1030 = vadd.f32 %v982, 1.0
      %v1031 = vadd.f32 %v983, 1.0
      %v1032 = vadd.f32 %v984, 1.0
      %v1033 = vadd.f32 %v985, 1.0
      %v1034 = vadd.f32 %v986, 1.0
      %v1035 = vadd.f32 %v987, 1.0
      %v1036 = vadd.f32 %v988, 1.0
      %v1037 = vadd.f32 %v989, 1.0
      %v1038 = vadd.f32 %v990, 1.0
      %v1039 = vadd.f32 %v991, 1.0
      %v1040 = vadd.f32 %v992, 1.0
      %v1041 = vadd.f32 %v993, 1.0
      %v1042 = vadd.f32 %v994, 1.0
      %v1043 = vadd.f32 %v995, 1.0
      %v1044 = vadd.f32 %v996, 1.0
      %v1045 = vadd.f32 %v997, 1.0
      %v1046 = vadd.f32 %v998, 1.0
      %v1047 = vadd.f32 %v999, 1.0
      %v1048 = vadd.f32 %v1000, 1.0
      %v1049 = vadd.f32 %v1001, 1.0
      %v1050 = vadd.f32 %v1002, 1.0
      %v1051 = vadd.f32 %v1003, 1.0
      %v1052 = vadd.f32 %v1004, 1.0
      %v1053 = vadd.f32 %v1005, 1.0
      %v1054 = vadd.f32 %v1006, 1.0
      %v1055 = vmul.f32 %v1007, 0.5
      %v1056 = vmul.f32 %v1008, 0.5
      %v1057 = vmul.f32 %v1009, 0.5
      %v1058 = vmul.f32 %v1010, 0.5
      %v1059 = vmul.f32 %v1011, 0.5
      %v1060 = vmul.f32 %v1012, 0.5
      %v1061 = vmul.f32 %v1013, 0.5
      %v1062 = vmul.f32 %v1014, 0.5
      %v1063 = vmul.f32 %v1015, 0.5
      %v1064 = vmul.f32 %v1016, 0.5
      %v1065 = vmul.f32 %v1017, 0.5
      %v1066 = vmul.f32 %v1018, 0.5
      %v1067 = vmul.f32 %v1019, 0.5
      %v1068 = vmul.f32 %v1020, 0.5
      %v1069 = vmul.f32 %v1021, 0.5
      %v1070 = vmul.f32 %v1022, 0.5
      %v1071 = vmul.f32 %v1023, 0.5
      %v1072 = vmul.f32 %v1024, 0.5
      %v1073 = vmul.f32 %v1025, 0.5
      %v1074 = vmul.f32 %v1026, 0.5
      %v1075 = vmul.f32 %v1027, 0.5
      %v1076 = vmul.f32 %v1028, 0.5
      %v1077 = vmul.f32 %v1029, 0.5
      %v1078 = vmul.f32 %v1030, 0.5
      %v1079 = vmul.f32 %v1031, 0.5
      %v1080 = vmul.f32 %v1032, 0.5
      %v1081 = vmul.f32 %v1033, 0.5
      %v1082 = vmul.f32 %v1034, 0.5
      %v1083 = vmul.f32 %v1035, 0.5
      %v1084 = vmul.f32 %v1036, 0.5
      %v1085 = vmul.f32 %v1037, 0.5
      %v1086 = vmul.f32 %v1038, 0.5
      %v1087 = vmul.f32 %v1039, 0.5
      %v1088 = vmul.f32 %v1040, 0.5
      %v1089 = vmul.f32 %v1041, 0.5
      %v1090 = vmul.f32 %v1042, 0.5
      %v1091 = vmul.f32 %v1043, 0.5
      %v1092 = vmul.f32 %v1044, 0.5
      %v1093 = vmul.f32 %v1045, 0.5
      %v1094 = vmul.f32 %v1046, 0.5
      %v1095 = vmul.f32 %v1047, 0.5
      %v1096 = vmul.f32 %v1048, 0.5
      %v1097 = vmul.f32 %v1049, 0.5
      %v1098 = vmul.f32 %v1050, 0.5
      %v1099 = vmul.f32 %v1051, 0.5
      %v1100 = vmul.f32 %v1052, 0.5
      %v1101 = vmul.f32 %v1053, 0.5
      %v1102 = vmul.f32 %v1054, 0.5
      %v1103 = vmul.f32 %v601, %v1055
      %v1104 = vmul.f32 %v603, %v1056
      %v1105 = vmul.f32 %v605, %v1057
      %v1106 = vmul.f32 %v607, %v1058
      %v1107 = vmul.f32 %v611, %v1059
      %v1108 = vmul.f32 %v613, %v1060
      %v1109 = vmul.f32 %v615, %v1061
      %v1110 = vmul.f32 %v617, %v1062
      %v1111 = vmul.f32 %v621, %v1063
      %v1112 = vmul.f32 %v623, %v1064
      %v1113 = vmul.f32 %v625, %v1065
      %v1114 = vmul.f32 %v627, %v1066
      %v1115 = vmul.f32 %v631, %v1067
      %v1116 = vmul.f32 %v633, %v1068
      %v1117 = vmul.f32 %v635, %v1069
      %v1118 = vmul.f32 %v637, %v1070
      %v1119 = vmul.f32 %v641, %v1071
      %v1120 = vmul.f32 %v643, %v1072
      %v1121 = vmul.f32 %v645, %v1073
      %v1122 = vmul.f32 %v647, %v1074
      %v1123 = vmul.f32 %v651, %v1075
      %v1124 = vmul.f32 %v653, %v1076
      %v1125 = vmul.f32 %v655, %v1077
      %v1126 = vmul.f32 %v657, %v1078
      %v1127 = vmul.f32 %v661, %v1079
      %v1128 = vmul.f32 %v663, %v1080
      %v1129 = vmul.f32 %v665, %v1081
      %v1130 = vmul.f32 %v667, %v1082
      %v1131 = vmul.f32 %v671, %v1083
      %v1132 = vmul.f32 %v673, %v1084
      %v1133 = vmul.f32 %v675, %v1085
      %v1134 = vmul.f32 %v677, %v1086
      %v1135 = vmul.f32 %v681, %v1087
      %v1136 = vmul.f32 %v683, %v1088
      %v1137 = vmul.f32 %v685, %v1089
      %v1138 = vmul.f32 %v687, %v1090
      %v1139 = vmul.f32 %v691, %v1091
      %v1140 = vmul.f32 %v693, %v1092
      %v1141 = vmul.f32 %v695, %v1093
      %v1142 = vmul.f32 %v697, %v1094
      %v1143 = vmul.f32 %v701, %v1095
      %v1144 = vmul.f32 %v703, %v1096
      %v1145 = vmul.f32 %v705, %v1097
      %v1146 = vmul.f32 %v707, %v1098
      %v1147 = vmul.f32 %v711, %v1099
      %v1148 = vmul.f32 %v713, %v1100
      %v1149 = vmul.f32 %v715, %v1101
      %v1150 = vmul.f32 %v717, %v1102
      %v1151 = vld [vmem:[%s3] sm:$0xff]
      %v1152 = vpack.c.bf16 %v1105, %v1103
      %v1153 = vpack.c.bf16 %v1106, %v1104
      %v1154 = vpack.c.bf16 %v1109, %v1107
      %v1155 = vpack.c.bf16 %v1110, %v1108
      %v1156 = vpack.c.bf16 %v1113, %v1111
      %v1157 = vpack.c.bf16 %v1114, %v1112
      %v1158 = vpack.c.bf16 %v1117, %v1115
      %v1159 = vpack.c.bf16 %v1118, %v1116
      %v1160 = vpack.c.bf16 %v1121, %v1119
      %v1161 = vpack.c.bf16 %v1122, %v1120
      %v1162 = vpack.c.bf16 %v1125, %v1123
      %v1163 = vpack.c.bf16 %v1126, %v1124
      %v1164 = vpack.c.bf16 %v1129, %v1127
      %v1165 = vpack.c.bf16 %v1130, %v1128
      %v1166 = vpack.c.bf16 %v1133, %v1131
      %v1167 = vpack.c.bf16 %v1134, %v1132
      %v1168 = vpack.c.bf16 %v1137, %v1135
      %v1169 = vpack.c.bf16 %v1138, %v1136
      %v1170 = vpack.c.bf16 %v1141, %v1139
      %v1171 = vpack.c.bf16 %v1142, %v1140
      %v1172 = vpack.c.bf16 %v1145, %v1143
      %v1173 = vpack.c.bf16 %v1146, %v1144
      %v1174 = vpack.c.bf16 %v1149, %v1147
      %v1175 = vpack.c.bf16 %v1150, %v1148
      %v1176 = vld [vmem:[%s4] sm:$0xff]
      %1178 = vset.pattern.permute.xlu0 0
      %1179 = vperm.xlu0 %1178, %v1176
      %v1180 = vpop.permute.xlu0 %1179
      %v1183 = vunpack.c.l.b16 %v1151
      %v1184 = vunpack.c.h.b16 %v1151
      %v1185 = vpack.c.b16 %v1183, %v1183
      %v1186 = vpack.c.b16 %v1184, %v1184
      %vm1188 = vcmask 523264
      %v1190 = vsel %vm1188, %v1186, 0
      %1192 = vmatprep.subr.bf16.mxu0 %v1153
      %1193 = vmatpush1.bf16.msra.mxu0 %v1152
      %1194 = vmatprep.subr.bf16.mxu0 %v1155
      %1195 = vmatpush1.bf16.msra.mxu0 %v1154
      %1196 = vmatprep.subr.bf16.mxu0 %v1157
      %1197 = vmatpush1.bf16.msra.mxu0 %v1156
      %1198 = vmatprep.subr.bf16.mxu0 %v1159
      %1199 = vmatpush1.bf16.msra.mxu0 %v1158
      %1200 = vmatprep.subr.bf16.mxu0 %v1161
      %1201 = vmatpush1.bf16.msra.mxu0 %v1160
      %1202 = vmatprep.subr.bf16.mxu0 %v1163
      %1203 = vmatpush1.bf16.msra.mxu0 %v1162
      %1204 = vmatprep.subr.bf16.mxu0 %v1165
      %1205 = vmatpush1.bf16.msra.mxu0 %v1164
      %1206 = vmatprep.subr.bf16.mxu0 %v1167
      %1207 = vmatpush1.bf16.msra.mxu0 %v1166
      %1208 = vmatprep.subr.bf16.mxu0 %v1169
      %1209 = vmatpush1.bf16.msra.mxu0 %v1168
      %1210 = vmatprep.subr.bf16.mxu0 %v1171
      %1211 = vmatpush1.bf16.msra.mxu0 %v1170
      %1212 = vmatprep.subr.bf16.mxu0 %v1173
      %1213 = vmatpush1.bf16.msra.mxu0 %v1172
      %1214 = vmatprep.subr.bf16.mxu0 %v1175
      %1215 = vmatpush1.bf16.msra.mxu0 %v1174
      %1216 = vmatprep.subr.bf16.mxu0 0
      %1217 = vmatpush1.bf16.msra.mxu0 0
      %1218 = vmatprep.subr.bf16.mxu0 0
      %1219 = vmatpush1.bf16.msra.mxu0 0
      %1220 = vmatprep.subr.bf16.mxu0 0
      %1221 = vmatpush1.bf16.msra.mxu0 0
      %1222 = vmatprep.subr.bf16.mxu0 0
      %1223 = vmatpush1.bf16.msra.mxu0 0
      %1224 = vmatprep.mubr.bf16.mxu0 %v1190
      %1225 = vmatmul.mubr.bf16.gmra.mrb[0].mxu0 %v1185
      %v1226 = vpop.f32.mrb[0].mxu0
      %v1227 = vadd.f32 %v1180, %v1226
      %v1228 = vpop.f32.mrb[0].mxu0
      %v1229 = vadd.f32 %v1180, %v1228
      %v1230 = vpop.f32.mrb[0].mxu0
      %v1231 = vpop.f32.mrb[0].mxu0
      %1232 = vdwg.mxu0
      %1233 = vst [vmem:[%s262] sm:$0x3f] %v1227
      %1234 = vst [vmem:[%s262 + $0x8] sm:$0x3f] %v1229
      %s1235 = smul.u32 2, %s21
      %p1236 = scmp.lt.s32.totalorder %s20, 1
      %s1237 = scalar_select %p1236, %s20, 1
      %p1238 = scmp.lt.s32.totalorder %s1235, 1
      %s1239 = scalar_select %p1238, %s1235, 1
      %s1240 = smul.addr %s1237, 2
      %s1241 = sadd.s32 %s1239, %s1240
      %s1242 = smul.addr %s1241, 8
      %s1243 = scalar_lea.vmem %s5, %s1242
      // Predicated region
      $region41: #{last_layer_forward.1} parent=39 // pred_check
        %p1244 = pneg %p160
      $region42: #{last_layer_forward.1} parent=39 // pred_check_branch
        %1246 = sbr.rel (%p1244) target = $region44
      $region43: #{last_layer_forward.1} parent=39 // pred_region
        %s1247 = smul.u32 2, %s21
      $region44: #{last_layer_forward.1} parent=39 // pred_fallthru
        _
    $region40: #{last_layer_forward.1} parent=5 // pred_fallthru
      _
    %p1248 = scmp.le.s32.totalorder 2, %s11
    // Predicated region
    $region45: #{last_layer_forward.1} parent=5 // pred_check
      %p1249 = pneg %p1248
    $region46: #{last_layer_forward.1} parent=5 // pred_check_branch
      %1251 = sbr.rel (%p1249) target = $region48
    $region47: #{last_layer_forward.1} parent=5 // pred_region
      %s1252 = ssub.s32 %s11, 2
      // Predicated region
      $region49: #{last_layer_forward.1} parent=47 // pred_check
        %p1253 = pneg %p166
      $region50: #{last_layer_forward.1} parent=47 // pred_check_branch
        %1255 = sbr.rel (%p1253) target = $region52
      $region51: #{last_layer_forward.1} parent=47 // pred_region
        %s1256 = smul.u32 2, %s23
        %p1257 = scmp.lt.s32.totalorder %s22, 1
        %s1258 = scalar_select %p1257, %s22, 1
        %p1259 = scmp.lt.s32.totalorder %s1256, 1
        %s1260 = scalar_select %p1259, %s1256, 1
        %s1261 = smul.addr %s1258, 2
        %s1262 = sadd.s32 %s1260, %s1261
        %s1263 = smul.addr %s1262, 8
        %s1264 = scalar_lea.vmem %s5, %s1263
      $region52: #{last_layer_forward.1} parent=47 // pred_fallthru
        _
    $region48: #{last_layer_forward.1} parent=5 // pred_fallthru
      _
  $region6: #{last_layer_forward.1} parent=0 // loop_footer
    %s15 = sadd.s32 1, %s11
  $region7: #{last_layer_forward.1} parent=0 // loop_footer_branch
    %10 = sbr.rel target = $region3
  $region8: #{last_layer_forward.1} parent=0 // loop_exit
    _

</llo_original>
